<compile_context>
chip_gen: v7x
topology: tpu7x:2x2x1
jax: 0.10.0
libtpu: 0.0.40
codegen_flags: <defaults>
</compile_context>

<pallas_src>
import jax
import jax.numpy as jnp
from jax import lax
from jax.experimental import pallas as pl
from jax.experimental.pallas import tpu as pltpu


def _round_up(n, m):
    return ((n + m - 1) // m) * m


def _leaky_relu(x, negative_slope=0.1):
    # Bit-identical to where(x > 0, x, slope * x) for 0 < slope < 1, but one
    # fewer VALU op per vreg (mul+max vs cmp+mul+select).
    return jnp.maximum(x, negative_slope * x)


def generator_kernel(x0_ref, x1_ref, w_ref, o_ref):
    """x0_ref, x1_ref: (1, TB) input / noise rows (batch on lanes).
    w_ref: (d, 4 + d + 2) packed weight slab, columns:
       0: fc1 weight col for `input`, 1: fc1 weight col for `noise`,
       2: fc1 bias, 3: fc2 bias, 4:4+d: fc2 weight (out, in),
       4+d: fc3 weight (as a length-d column), row 0 of col 5+d: fc3 bias.
    o_ref: (1, TB) output row."""
    d = w_ref.shape[0]

    x0 = x0_ref[...].astype(jnp.float32)           # (1, TB)
    x1 = x1_ref[...].astype(jnp.float32)           # (1, TB)
    w = w_ref[...]                                 # (d, 4+d+2) f32

    w1_0 = w[:, 0:1]                               # (d, 1)
    w1_1 = w[:, 1:2]                               # (d, 1)
    b1 = w[:, 2:3]                                 # (d, 1)
    b2 = w[:, 3:4]                                 # (d, 1)
    w2 = w[:, 4:4 + d]                             # (d, d)  [out, in]
    w3 = w[:, 4 + d:5 + d]                         # (d, 1)  fc3 weight column
    b3 = w[0:1, 5 + d:6 + d]                       # (1, 1)

    # fc1: two rank-1 broadcast FMAs (pure VPU, no MXU push with K=2).
    h1 = w1_0 * x0 + w1_1 * x1 + b1                # (d, TB)
    h1 = _leaky_relu(h1, 0.1)

    # fc2: the only real matmul -> MXU, full f32 accumulation.
    h2 = jnp.dot(w2, h1, preferred_element_type=jnp.float32,
                 precision=lax.Precision.HIGHEST) + b2
    h2 = _leaky_relu(h2, 0.1)

    # fc3: broadcast multiply + sublane reduce (XLU) -> lane-dense (1, TB).
    o = jnp.sum(w3 * h2, axis=0, keepdims=True) + b3
    o_ref[...] = o.astype(o_ref.dtype)


def pack_params(params):
    """Pack PyTorch-convention params (w:[out,in], b:[out]) into one f32 slab."""
    w1, b1, w2, b2, w3, b3 = params
    d = w1.shape[0]
    slab = jnp.zeros((d, 4 + d + 2), dtype=jnp.float32)
    slab = slab.at[:, 0].set(w1[:, 0].astype(jnp.float32))
    slab = slab.at[:, 1].set(w1[:, 1].astype(jnp.float32))
    slab = slab.at[:, 2].set(b1.astype(jnp.float32))
    slab = slab.at[:, 3].set(b2.astype(jnp.float32))
    slab = slab.at[:, 4:4 + d].set(w2.astype(jnp.float32))
    slab = slab.at[:, 4 + d].set(w3[0, :].astype(jnp.float32))
    slab = slab.at[0, 5 + d].set(b3[0].astype(jnp.float32))
    return slab


def generator_forward(inp, noise, slab, *, output_size=1, block_b=32768):
    """inp, noise: (B,) or (B, 1).  slab: packed weights from pack_params.
    Returns (B, output_size) f32, matching Generator.forward."""
    if inp.ndim == 2:
        assert inp.shape[1] == 1, "expected (B, 1) input"
        inp = inp[:, 0]
    if noise.ndim == 2:
        assert noise.shape[1] == 1, "expected (B, 1) noise"
        noise = noise[:, 0]
    assert output_size == 1, "kernel packs fc3 for output_size == 1"

    B = int(inp.shape[0])
    d, n_cols = slab.shape

    # Lane-dense batch tile (multiple of 128):
    #  * capped by block_b (default 32768; keeps per-step VMEM << 48 MiB so it
    #    also fits v7x's 64 MiB/TC and v5e once vmem_limit_bytes is raised),
    #  * capped by ~half the batch so the grid keeps >= 2 steps whenever
    #    B > 128 and v7x's second TensorCore gets work on the parallel axis.
    tb_cap = max(128, _round_up(block_b, 128))
    tb_half = max(128, _round_up(pl.cdiv(max(B, 1), 2), 128))
    TB = min(tb_cap, tb_half)
    grid = (pl.cdiv(max(B, 1), TB),)

    # No wrapper-side pad / cast copies: (B,) -> (1, B) reshape is free, the
    # f32 cast happens in-kernel, and the ragged final tile is handled by
    # Pallas' masked boundary block (OOB lanes are dropped on store).
    x0 = inp.reshape(1, B)
    x1 = noise.reshape(1, B)

    # Advisory cost: ~ fc1 (4d) + leaky (4d) + fc2 (2d^2 + d) + fc3 (2d + 1)
    # flops per batch element; 3 f32 HBM touches per element + weight slab.
    flops = B * (2 * d * d + 11 * d + 1)
    bytes_accessed = B * (x0.dtype.itemsize + x1.dtype.itemsize + 4) + 4 * d * n_cols

    out_t = pl.pallas_call(
        generator_kernel,
        out_shape=jax.ShapeDtypeStruct((1, B), jnp.float32),
        grid_spec=pltpu.PrefetchScalarGridSpec(
            num_scalar_prefetch=0,
            grid=grid,
            in_specs=[
                pl.BlockSpec((1, TB), lambda i: (0, i)),       # input row
                pl.BlockSpec((1, TB), lambda i: (0, i)),       # noise row
                pl.BlockSpec((d, n_cols), lambda i: (0, 0)),   # resident weights
            ],
            out_specs=pl.BlockSpec((1, TB), lambda i: (0, i)),
        ),
        compiler_params=pltpu.CompilerParams(
            dimension_semantics=("parallel",),     # v7x: shard batch over 2 TCs
            vmem_limit_bytes=48 * 1024 * 1024,     # v5e default is only 16 MiB
        ),
        cost_estimate=pl.CostEstimate(
            flops=flops, transcendentals=0, bytes_accessed=bytes_accessed),
    )(x0, x1, slab)

    return out_t[0].reshape(B, output_size)


def init_generator_params(key, d=10, input_size=2, output_size=1):
    """Matches __initialize_weights: Linear weight ~ N(0, 1), bias = 0.
    PyTorch convention: weight [out, in], bias [out]."""
    k1, k2, k3 = jax.random.split(key, 3)
    w1 = jax.random.normal(k1, (d, input_size), dtype=jnp.float32)
    b1 = jnp.zeros((d,), dtype=jnp.float32)
    w2 = jax.random.normal(k2, (d, d), dtype=jnp.float32)
    b2 = jnp.zeros((d,), dtype=jnp.float32)
    w3 = jax.random.normal(k3, (output_size, d), dtype=jnp.float32)
    b3 = jnp.zeros((output_size,), dtype=jnp.float32)
    return (w1, b1, w2, b2, w3, b3)


def generator_reference(inp, noise, params):
    """Plain-JAX reference with PyTorch-layout weights."""
    w1, b1, w2, b2, w3, b3 = params
    x = jnp.concatenate([inp, noise], axis=1)
    h = jnp.dot(x, w1.T, precision=lax.Precision.HIGHEST) + b1
    h = jnp.where(h > 0, h, 0.1 * h)
    h = jnp.dot(h, w2.T, precision=lax.Precision.HIGHEST) + b2
    h = jnp.where(h > 0, h, 0.1 * h)
    return jnp.dot(h, w3.T, precision=lax.Precision.HIGHEST) + b3


if __name__ == "__main__":
    # TODO(synk): nn.BatchNorm1d is constructed in __init__ but never used in
    # forward, so it is intentionally not implemented here.
    key = jax.random.PRNGKey(0)
    kp, ki, kn, ki2, kn2, ki3, kn3 = jax.random.split(key, 7)

    d, input_size, output_size = 10, 2, 1
    params = init_generator_params(kp, d=d, input_size=input_size,
                                   output_size=output_size)
    slab = pack_params(params)

    # Case 1: tiny batch (B=8) -> single, partially-masked 128-lane block.
    B = 8
    inp = jax.random.normal(ki, (B, 1), dtype=jnp.float32)
    noise = jax.random.normal(kn, (B, 1), dtype=jnp.float32)
    out = jax.block_until_ready(generator_forward(inp, noise, slab))
    ref = generator_reference(inp, noise, params)
    assert out.shape == (B, output_size), out.shape
    assert jnp.allclose(out, ref, atol=1e-3, rtol=1e-3), (out, ref)

    # Case 2: ragged batch (B=300) with small tiles -> 3-step pipelined grid
    # exercising the masked final block (no wrapper-side padding).
    B2 = 300
    inp2 = jax.random.normal(ki2, (B2, 1), dtype=jnp.float32)
    noise2 = jax.random.normal(kn2, (B2, 1), dtype=jnp.float32)
    out2 = jax.block_until_ready(
        generator_forward(inp2, noise2, slab, block_b=128))
    ref2 = generator_reference(inp2, noise2, params)
    assert out2.shape == (B2, output_size), out2.shape
    assert jnp.allclose(out2, ref2, atol=1e-3, rtol=1e-3)

    # Case 3: default tile sizing path -> TB = 512, grid = 2 (>= 2 steps so
    # both v7x TensorCores would get work on the parallel batch axis).
    B3 = 1000
    inp3 = jax.random.normal(ki3, (B3, 1), dtype=jnp.float32)
    noise3 = jax.random.normal(kn3, (B3, 1), dtype=jnp.float32)
    out3 = jax.block_until_ready(generator_forward(inp3, noise3, slab))
    ref3 = generator_reference(inp3, noise3, params)
    assert out3.shape == (B3, output_size), out3.shape
    assert jnp.allclose(out3, ref3, atol=1e-3, rtol=1e-3)

    print("KERNEL_OK")
</pallas_src>

<mosaic_0001>
module attributes {stable_mosaic.version = 11 : i64} {
  func.func @generator_kernel(%arg0: i32, %arg1: memref<1x128xf32, #tpu.memory_space<vmem>>, %arg2: memref<1x128xf32, #tpu.memory_space<vmem>>, %arg3: memref<10x16xf32, #tpu.memory_space<vmem>>, %arg4: memref<1x128xf32, #tpu.memory_space<vmem>>) attributes {dimension_semantics = [#tpu.dimension_semantics<parallel>], iteration_bounds = array<i64: 1>, scalar_prefetch = 0 : i64, scratch_operands = 0 : i64, tpu.core_type = #tpu.core_type<tc>, window_params = [{transform_indices = @transform_0, window_bounds = array<i64: 1, 128>}, {transform_indices = @transform_1, window_bounds = array<i64: 1, 128>}, {pipeline_mode = #tpu.pipeline_mode<synchronous>, transform_indices = @transform_2, window_bounds = array<i64: 10, 16>}, {transform_indices = @transform_3, window_bounds = array<i64: 1, 128>}]} {
    %c0 = arith.constant 0 : index
    %c0_0 = arith.constant 0 : index
    %0 = vector.load %arg1[%c0, %c0_0] : memref<1x128xf32, #tpu.memory_space<vmem>>, vector<1x128xf32>
    %c0_1 = arith.constant 0 : index
    %c0_2 = arith.constant 0 : index
    %1 = vector.load %arg2[%c0_1, %c0_2] : memref<1x128xf32, #tpu.memory_space<vmem>>, vector<1x128xf32>
    %c0_3 = arith.constant 0 : index
    %c0_4 = arith.constant 0 : index
    %2 = vector.load %arg3[%c0_3, %c0_4] : memref<10x16xf32, #tpu.memory_space<vmem>>, vector<10x16xf32>
    %3 = vector.extract_strided_slice %2 {offsets = [0, 0], sizes = [10, 1], strides = [1, 1]} : vector<10x16xf32> to vector<10x1xf32>
    %4 = vector.extract_strided_slice %2 {offsets = [0, 1], sizes = [10, 1], strides = [1, 1]} : vector<10x16xf32> to vector<10x1xf32>
    %5 = vector.extract_strided_slice %2 {offsets = [0, 2], sizes = [10, 1], strides = [1, 1]} : vector<10x16xf32> to vector<10x1xf32>
    %6 = vector.extract_strided_slice %2 {offsets = [0, 3], sizes = [10, 1], strides = [1, 1]} : vector<10x16xf32> to vector<10x1xf32>
    %7 = vector.extract_strided_slice %2 {offsets = [0, 4], sizes = [10, 10], strides = [1, 1]} : vector<10x16xf32> to vector<10x10xf32>
    %8 = vector.extract_strided_slice %2 {offsets = [0, 14], sizes = [10, 1], strides = [1, 1]} : vector<10x16xf32> to vector<10x1xf32>
    %9 = vector.extract_strided_slice %2 {offsets = [0, 15], sizes = [1, 1], strides = [1, 1]} : vector<10x16xf32> to vector<1x1xf32>
    %10 = vector.broadcast %3 : vector<10x1xf32> to vector<10x128xf32>
    %11 = vector.broadcast %0 : vector<1x128xf32> to vector<10x128xf32>
    %12 = arith.mulf %10, %11 : vector<10x128xf32>
    %13 = vector.broadcast %4 : vector<10x1xf32> to vector<10x128xf32>
    %14 = vector.broadcast %1 : vector<1x128xf32> to vector<10x128xf32>
    %15 = arith.mulf %13, %14 : vector<10x128xf32>
    %16 = arith.addf %12, %15 : vector<10x128xf32>
    %17 = vector.broadcast %5 : vector<10x1xf32> to vector<10x128xf32>
    %18 = arith.addf %16, %17 : vector<10x128xf32>
    %cst = arith.constant 1.000000e-01 : f32
    %19 = vector.broadcast %cst : f32 to vector<10x128xf32>
    %20 = arith.mulf %19, %18 : vector<10x128xf32>
    %21 = arith.maximumf %18, %20 : vector<10x128xf32>
    %cst_5 = arith.constant dense<0.000000e+00> : vector<10x128xf32>
    %22 = tpu.matmul %7, %21, %cst_5 {dimension_numbers = #tpu.dot_dimension_numbers<[1], [0], [0], [1], [0, 0, 1, 1], [], []>, precision = #tpu.contract_precision<fp32>} : vector<10x10xf32>, vector<10x128xf32>, vector<10x128xf32> -> vector<10x128xf32>
    %23 = vector.broadcast %6 : vector<10x1xf32> to vector<10x128xf32>
    %24 = arith.addf %22, %23 : vector<10x128xf32>
    %cst_6 = arith.constant 1.000000e-01 : f32
    %25 = vector.broadcast %cst_6 : f32 to vector<10x128xf32>
    %26 = arith.mulf %25, %24 : vector<10x128xf32>
    %27 = arith.maximumf %24, %26 : vector<10x128xf32>
    %28 = vector.broadcast %8 : vector<10x1xf32> to vector<10x128xf32>
    %29 = arith.mulf %28, %27 : vector<10x128xf32>
    %cst_7 = arith.constant dense<0.000000e+00> : vector<128xf32>
    %30 = vector.multi_reduction <add>, %29, %cst_7 [0] : vector<10x128xf32> to vector<128xf32>
    %31 = vector.shape_cast %30 : vector<128xf32> to vector<1x128xf32>
    %32 = vector.broadcast %9 : vector<1x1xf32> to vector<1x128xf32>
    %33 = arith.addf %31, %32 : vector<1x128xf32>
    %c0_8 = arith.constant 0 : index
    %c0_9 = arith.constant 0 : index
    %34 = vector.load %arg4[%c0_8, %c0_9] : memref<1x128xf32, #tpu.memory_space<vmem>>, vector<1x128xf32>
    tpu.vector_store %arg4[%c0_8, %c0_9], %33 {strides = array<i32>} : memref<1x128xf32, #tpu.memory_space<vmem>>, vector<1x128xf32>,
    return
  }
  func.func @transform_0(%arg0: i32) -> (i32, i32) {
    %c0_i32 = arith.constant 0 : i32
    %c0_i32_0 = arith.constant 0 : i32
    return %c0_i32, %arg0 : i32, i32
  }
  func.func @transform_1(%arg0: i32) -> (i32, i32) {
    %c0_i32 = arith.constant 0 : i32
    %c0_i32_0 = arith.constant 0 : i32
    return %c0_i32, %arg0 : i32, i32
  }
  func.func @transform_2(%arg0: i32) -> (i32, i32) {
    %c0_i32 = arith.constant 0 : i32
    %c0_i32_0 = arith.constant 0 : i32
    %c0_i32_1 = arith.constant 0 : i32
    return %c0_i32, %c0_i32_0 : i32, i32
  }
  func.func @transform_3(%arg0: i32) -> (i32, i32) {
    %c0_i32 = arith.constant 0 : i32
    %c0_i32_0 = arith.constant 0 : i32
    return %c0_i32, %arg0 : i32, i32
  }
}

</mosaic_0001>

<llo_original>
// kernel: tpu_custom_call.1
$region0: #{tpu_custom_call.1}
  #allocation0 [shape = 'u32[]', space=smem, size = 0x4, offset = 0x4, fixed_abs, tag = 'smem constant byte address 0x4 - core index']
  #allocation1 [shape = 'u32[144,128]{1,0:T(1,128)}', space=vmem, size = 0x12000, scoped, tag = 'internal scratch']
  %s0 = inlined_call_operand.hbm [shape: f32[1,8], index: 0, kind: input, shape index: {}]
  %s1 = inlined_call_operand.vmem [shape: f32[1,8], index: 1, kind: input, shape index: {}]
  %s2 = inlined_call_operand.hbm [shape: f32[10,16], index: 2, kind: input, shape index: {}]
  %s3 = inlined_call_operand.hbm [shape: f32[1,8], index: 3, kind: output, shape index: {}]
  %s4 = sld [smem:[#allocation0]]
  $region30: #{tpu_custom_call.1} parent=0
    _
  %s6 = ssub.s32 1, %s4
  %s7 = scalar_select 0, %s6, %s4
  $region1: #{tpu_custom_call.1} parent=0
    #allocation2 [shape = 'u8[512]{0}', space=vmem, size = 0x400, scoped, tag = 'input window, operand 0, single buffered']
    #allocation3 [shape = 's32[1]{0}', space=sflag, size = 0x4, scoped, tag = 'scoped memory for tpu_custom_call.1']
    #allocation4 [shape = 's32[1]{0}', space=sflag, size = 0x4, scoped, tag = 'scoped memory for tpu_custom_call.1']
    #allocation5 [shape = 'u8[8192]{0}', space=vmem, size = 0x2000, scoped, tag = 'input window, operand 2, single buffered']
    #allocation6 [shape = 's32[1]{0}', space=sflag, size = 0x4, scoped, tag = 'scoped memory for tpu_custom_call.1']
    #allocation7 [shape = 'u8[512]{0}', space=vmem, size = 0x400, scoped, tag = 'output window, operand 0, single buffered']
    %8 = vsyncpa [#allocation3], 0
    %9 = vsyncpa [#allocation6], 0
    %10 = vsyncpa [#allocation4], 0
    // Predicated region
    $region2: #{tpu_custom_call.1} parent=1 // pred_check
      _
    $region3: #{tpu_custom_call.1} parent=1 // pred_check_branch
      %12 = sbr.rel (0) target = $region5
    $region4: #{tpu_custom_call.1} parent=1 // pred_region
      %s14 = ssub.s32 16, 16
      %15 = vsyncadd [#allocation3], %s14
      %s17 = sshll.u32 [#allocation2], 4
      %s18 = int_to_ptr.vmem [resolvable:$true] %s17
      %20 = dma.hbm_to_vmem [thread:$0]  %s0, 16, %s18, [#allocation3]
    $region5: #{tpu_custom_call.1} parent=1 // pred_fallthru
      _
    // Predicated region
    $region6: #{tpu_custom_call.1} parent=1 // pred_check
      _
    $region7: #{tpu_custom_call.1} parent=1 // pred_check_branch
      %22 = sbr.rel (0) target = $region9
    $region8: #{tpu_custom_call.1} parent=1 // pred_region
      _
    $region9: #{tpu_custom_call.1} parent=1 // pred_fallthru
      _
    // Predicated region
    $region10: #{tpu_custom_call.1} parent=1 // pred_check
      _
    $region11: #{tpu_custom_call.1} parent=1 // pred_check_branch
      %24 = sbr.rel (0) target = $region13
    $region12: #{tpu_custom_call.1} parent=1 // pred_region
      %s26 = ssub.s32 256, 256
      %27 = vsyncadd [#allocation6], %s26
      %s28 = sshll.u32 [#allocation5], 4
      %s29 = int_to_ptr.vmem [resolvable:$true] %s28
      %34 = dma.hbm_to_vmem [thread:$0]  %s2, 256, %s29, [#allocation6], 128, 128, 8
    $region13: #{tpu_custom_call.1} parent=1 // pred_fallthru
      _
    // Predicated region
    $region14: #{tpu_custom_call.1} parent=1 // pred_check
      _
    $region15: #{tpu_custom_call.1} parent=1 // pred_check_branch
      %36 = sbr.rel (0) target = $region17
    $region16: #{tpu_custom_call.1} parent=1 // pred_region
      %37 = dma.done [#allocation3], 16
    $region17: #{tpu_custom_call.1} parent=1 // pred_fallthru
      _
    // Predicated region
    $region18: #{tpu_custom_call.1} parent=1 // pred_check
      _
    $region19: #{tpu_custom_call.1} parent=1 // pred_check_branch
      %39 = sbr.rel (0) target = $region21
    $region20: #{tpu_custom_call.1} parent=1 // pred_region
      %40 = dma.done [#allocation6], 256
    $region21: #{tpu_custom_call.1} parent=1 // pred_fallthru
      _
    %v41 = vld [vmem:[#allocation2] sm:$0x1]
    %v42 = vld [vmem:[%s1] sm:$0x1]
    %v43 = vld [vmem:[#allocation5] sm:$0xff]
    %v44 = vld [vmem:[#allocation5 + $0x8] sm:$0x3]
    %46 = vset.pattern.permute.xlu0 0
    %47 = vperm.xlu0 %46, %v43
    %v48 = vpop.permute.xlu0 %47
    %51 = vset.pattern.permute.xlu0 0
    %52 = vperm.xlu0 %51, %v44
    %v53 = vpop.permute.xlu0 %52
    %v56 = vlaneseq
    %v57 = vshrl.u32 %v56, 7
    %v58 = vsub.s32 0, %v57
    %v59 = vrot.slane %v41, %v58
    %v61 = vmul.f32 %v48, %v59
    %v62 = vmul.f32 %v53, %v59
    %63 = vset.pattern.permute.xlu0 1
    %64 = vperm.xlu0 %63, %v43
    %v65 = vpop.permute.xlu0 %64
    %67 = vset.pattern.permute.xlu0 1
    %68 = vperm.xlu0 %67, %v44
    %v69 = vpop.permute.xlu0 %68
    %v72 = vlaneseq
    %v73 = vshrl.u32 %v72, 7
    %v74 = vsub.s32 0, %v73
    %v75 = vrot.slane %v42, %v74
    %v77 = vmul.f32 %v65, %v75
    %v78 = vmul.f32 %v69, %v75
    %v79 = vadd.f32 %v61, %v77
    %v80 = vadd.f32 %v62, %v78
    %81 = vset.pattern.permute.xlu0 2
    %82 = vperm.xlu0 %81, %v43
    %v83 = vpop.permute.xlu0 %82
    %85 = vset.pattern.permute.xlu0 2
    %86 = vperm.xlu0 %85, %v44
    %v87 = vpop.permute.xlu0 %86
    %v89 = vadd.f32 %v79, %v83
    %v90 = vadd.f32 %v80, %v87
    %v91 = vmul.f32 %v89, 0.1
    %v92 = vmul.f32 %v90, 0.1
    %v93 = vmax.f32 %v89, %v91
    %v94 = vmax.f32 %v90, %v92
    %95 = vset.pattern.permute.xlu0 3
    %96 = vperm.xlu0 %95, %v43
    %v97 = vpop.permute.xlu0 %96
    %99 = vset.pattern.permute.xlu0 3
    %100 = vperm.xlu0 %99, %v44
    %v101 = vpop.permute.xlu0 %100
    %103 = vrot.lane.b32.xlu0 %v43, 124
    %v104 = vpop.permute.xlu0 %103
    %105 = vrot.lane.b32.xlu0 %v44, 124
    %v106 = vpop.permute.xlu0 %105
    %vm107 = vcmask 80896
    %v108 = vsel %vm107, %v104, 0
    %v110 = vsel %vm107, %v106, 0
    %vm112 = vcmask 1041408
    %v114 = vsel %vm112, %v94, 0
    %116 = vmatprep.subr.mxu0 0.0
    %v117 = vand.u32 %v93, 4294901760
    %118 = vmatpush1.msra.mxu0 %v117
    %119 = vmatprep.subr.mxu0 0.0
    %v120 = vand.u32 %v114, 4294901760
    %121 = vmatpush1.msra.mxu0 %v120
    %122 = vmatprep.subr.mxu0 0.0
    %123 = vmatpush1.msra.mxu0 0.0
    %124 = vmatprep.subr.mxu0 0.0
    %125 = vmatpush1.msra.mxu0 0.0
    %126 = vmatprep.subr.mxu0 0.0
    %127 = vmatpush1.msra.mxu0 0.0
    %128 = vmatprep.subr.mxu0 0.0
    %129 = vmatpush1.msra.mxu0 0.0
    %130 = vmatprep.subr.mxu0 0.0
    %131 = vmatpush1.msra.mxu0 0.0
    %132 = vmatprep.subr.mxu0 0.0
    %133 = vmatpush1.msra.mxu0 0.0
    %134 = vmatprep.subr.mxu0 0.0
    %135 = vmatpush1.msra.mxu0 0.0
    %136 = vmatprep.subr.mxu0 0.0
    %137 = vmatpush1.msra.mxu0 0.0
    %138 = vmatprep.subr.mxu0 0.0
    %139 = vmatpush1.msra.mxu0 0.0
    %140 = vmatprep.subr.mxu0 0.0
    %141 = vmatpush1.msra.mxu0 0.0
    %142 = vmatprep.subr.mxu0 0.0
    %143 = vmatpush1.msra.mxu0 0.0
    %144 = vmatprep.subr.mxu0 0.0
    %145 = vmatpush1.msra.mxu0 0.0
    %146 = vmatprep.subr.mxu0 0.0
    %147 = vmatpush1.msra.mxu0 0.0
    %148 = vmatprep.subr.mxu0 0.0
    %149 = vmatpush1.msra.mxu0 0.0
    %150 = vmatprep.subr.mxu0 0.0
    %151 = vmatpush1.msra.mxu0 0.0
    %152 = vmatprep.subr.mxu0 0.0
    %153 = vmatpush1.msra.mxu0 0.0
    %154 = vmatprep.subr.mxu0 0.0
    %155 = vmatpush1.msra.mxu0 0.0
    %156 = vmatprep.subr.mxu0 0.0
    %157 = vmatpush1.msra.mxu0 0.0
    %158 = vmatprep.subr.mxu0 0.0
    %159 = vmatpush1.msra.mxu0 0.0
    %160 = vmatprep.subr.mxu0 0.0
    %161 = vmatpush1.msra.mxu0 0.0
    %162 = vmatprep.subr.mxu0 0.0
    %163 = vmatpush1.msra.mxu0 0.0
    %164 = vmatprep.subr.mxu0 0.0
    %165 = vmatpush1.msra.mxu0 0.0
    %166 = vmatprep.subr.mxu0 0.0
    %167 = vmatpush1.msra.mxu0 0.0
    %168 = vmatprep.subr.mxu0 0.0
    %169 = vmatpush1.msra.mxu0 0.0
    %170 = vmatprep.subr.mxu0 0.0
    %171 = vmatpush1.msra.mxu0 0.0
    %172 = vmatprep.subr.mxu0 0.0
    %173 = vmatpush1.msra.mxu0 0.0
    %174 = vmatprep.subr.mxu0 0.0
    %175 = vmatpush1.msra.mxu0 0.0
    %176 = vmatprep.subr.mxu0 0.0
    %177 = vmatpush1.msra.mxu0 0.0
    %178 = vmatprep.subr.mxu0 0.0
    %179 = vmatpush1.msra.mxu0 0.0
    %180 = vmatprep.subr.mxu0 0.0
    %181 = vmatpush1.msra.mxu0 0.0
    %182 = vmatprep.mubr.f32.mxu0 0.0
    %v183 = vand.u32 %v108, 4294901760
    %v184 = vsub.f32 %v108, %v183
    %v185 = vand.u32 %v184, 4294901760
    %v186 = vsub.f32 %v184, %v185
    %v187 = vand.u32 %v186, 4294901760
    %188 = vmatmul.mubr.f32.gmra.mrb[0].mxu0 %v187
    %v189 = vpop.f32.mrb[0].mxu0
    %v190 = vadd.f32 %v97, %v189
    %v191 = vpop.f32.mrb[0].mxu0
    %192 = vmatprep.mubr.f32.mxu0 0.0
    %v193 = vand.u32 %v110, 4294901760
    %v194 = vsub.f32 %v110, %v193
    %v195 = vand.u32 %v194, 4294901760
    %v196 = vsub.f32 %v194, %v195
    %v197 = vand.u32 %v196, 4294901760
    %198 = vmatmul.mubr.f32.gmra.mrb[0].mxu0 %v197
    %v199 = vpop.f32.mrb[0].mxu0
    %v200 = vadd.f32 %v101, %v199
    %v201 = vpop.f32.mrb[0].mxu0
    %202 = vdwg.mxu0
    %203 = vmatprep.subr.mxu0 0.0
    %v204 = vand.u32 %v93, 4294901760
    %v205 = vsub.f32 %v93, %v204
    %v206 = vand.u32 %v205, 4294901760
    %v207 = vsub.f32 %v205, %v206
    %v208 = vand.u32 %v207, 4294901760
    %209 = vmatpush1.msra.mxu0 %v208
    %210 = vmatprep.subr.mxu0 0.0
    %v211 = vand.u32 %v114, 4294901760
    %v212 = vsub.f32 %v114, %v211
    %v213 = vand.u32 %v212, 4294901760
    %v214 = vsub.f32 %v212, %v213
    %v215 = vand.u32 %v214, 4294901760
    %216 = vmatpush1.msra.mxu0 %v215
    %217 = vmatprep.subr.mxu0 0.0
    %218 = vmatpush1.msra.mxu0 0.0
    %219 = vmatprep.subr.mxu0 0.0
    %220 = vmatpush1.msra.mxu0 0.0
    %221 = vmatprep.subr.mxu0 0.0
    %222 = vmatpush1.msra.mxu0 0.0
    %223 = vmatprep.subr.mxu0 0.0
    %224 = vmatpush1.msra.mxu0 0.0
    %225 = vmatprep.subr.mxu0 0.0
    %226 = vmatpush1.msra.mxu0 0.0
    %227 = vmatprep.subr.mxu0 0.0
    %228 = vmatpush1.msra.mxu0 0.0
    %229 = vmatprep.subr.mxu0 0.0
    %230 = vmatpush1.msra.mxu0 0.0
    %231 = vmatprep.subr.mxu0 0.0
    %232 = vmatpush1.msra.mxu0 0.0
    %233 = vmatprep.subr.mxu0 0.0
    %234 = vmatpush1.msra.mxu0 0.0
    %235 = vmatprep.subr.mxu0 0.0
    %236 = vmatpush1.msra.mxu0 0.0
    %237 = vmatprep.subr.mxu0 0.0
    %238 = vmatpush1.msra.mxu0 0.0
    %239 = vmatprep.subr.mxu0 0.0
    %240 = vmatpush1.msra.mxu0 0.0
    %241 = vmatprep.subr.mxu0 0.0
    %242 = vmatpush1.msra.mxu0 0.0
    %243 = vmatprep.subr.mxu0 0.0
    %244 = vmatpush1.msra.mxu0 0.0
    %245 = vmatprep.subr.mxu0 0.0
    %246 = vmatpush1.msra.mxu0 0.0
    %247 = vmatprep.subr.mxu0 0.0
    %248 = vmatpush1.msra.mxu0 0.0
    %249 = vmatprep.subr.mxu0 0.0
    %250 = vmatpush1.msra.mxu0 0.0
    %251 = vmatprep.subr.mxu0 0.0
    %252 = vmatpush1.msra.mxu0 0.0
    %253 = vmatprep.subr.mxu0 0.0
    %254 = vmatpush1.msra.mxu0 0.0
    %255 = vmatprep.subr.mxu0 0.0
    %256 = vmatpush1.msra.mxu0 0.0
    %257 = vmatprep.subr.mxu0 0.0
    %258 = vmatpush1.msra.mxu0 0.0
    %259 = vmatprep.subr.mxu0 0.0
    %260 = vmatpush1.msra.mxu0 0.0
    %261 = vmatprep.subr.mxu0 0.0
    %262 = vmatpush1.msra.mxu0 0.0
    %263 = vmatprep.subr.mxu0 0.0
    %264 = vmatpush1.msra.mxu0 0.0
    %265 = vmatprep.subr.mxu0 0.0
    %266 = vmatpush1.msra.mxu0 0.0
    %267 = vmatprep.subr.mxu0 0.0
    %268 = vmatpush1.msra.mxu0 0.0
    %269 = vmatprep.subr.mxu0 0.0
    %270 = vmatpush1.msra.mxu0 0.0
    %271 = vmatprep.subr.mxu0 0.0
    %272 = vmatpush1.msra.mxu0 0.0
    %273 = vmatprep.subr.mxu0 0.0
    %274 = vmatpush1.msra.mxu0 0.0
    %275 = vmatprep.subr.mxu0 0.0
    %276 = vmatpush1.msra.mxu0 0.0
    %277 = vmatprep.mubr.f32.mxu0 0.0
    %v278 = vand.u32 %v108, 4294901760
    %279 = vmatmul.mubr.f32.gmra.mrb[0].mxu0 %v278
    %v280 = vpop.f32.mrb[0].mxu0
    %v281 = vadd.f32 %v190, %v280
    %v282 = vpop.f32.mrb[0].mxu0
    %283 = vmatprep.mubr.f32.mxu0 0.0
    %v284 = vand.u32 %v110, 4294901760
    %285 = vmatmul.mubr.f32.gmra.mrb[0].mxu0 %v284
    %v286 = vpop.f32.mrb[0].mxu0
    %v287 = vadd.f32 %v200, %v286
    %v288 = vpop.f32.mrb[0].mxu0
    %289 = vdwg.mxu0
    %290 = vmatprep.subr.mxu0 0.0
    %v291 = vand.u32 %v93, 4294901760
    %v292 = vsub.f32 %v93, %v291
    %293 = vmatpush1.msra.mxu0 %v292
    %294 = vmatprep.subr.mxu0 0.0
    %v295 = vand.u32 %v114, 4294901760
    %v296 = vsub.f32 %v114, %v295
    %297 = vmatpush1.msra.mxu0 %v296
    %298 = vmatprep.subr.mxu0 0.0
    %299 = vmatpush1.msra.mxu0 0.0
    %300 = vmatprep.subr.mxu0 0.0
    %301 = vmatpush1.msra.mxu0 0.0
    %302 = vmatprep.subr.mxu0 0.0
    %303 = vmatpush1.msra.mxu0 0.0
    %304 = vmatprep.subr.mxu0 0.0
    %305 = vmatpush1.msra.mxu0 0.0
    %306 = vmatprep.subr.mxu0 0.0
    %307 = vmatpush1.msra.mxu0 0.0
    %308 = vmatprep.subr.mxu0 0.0
    %309 = vmatpush1.msra.mxu0 0.0
    %310 = vmatprep.subr.mxu0 0.0
    %311 = vmatpush1.msra.mxu0 0.0
    %312 = vmatprep.subr.mxu0 0.0
    %313 = vmatpush1.msra.mxu0 0.0
    %314 = vmatprep.subr.mxu0 0.0
    %315 = vmatpush1.msra.mxu0 0.0
    %316 = vmatprep.subr.mxu0 0.0
    %317 = vmatpush1.msra.mxu0 0.0
    %318 = vmatprep.subr.mxu0 0.0
    %319 = vmatpush1.msra.mxu0 0.0
    %320 = vmatprep.subr.mxu0 0.0
    %321 = vmatpush1.msra.mxu0 0.0
    %322 = vmatprep.subr.mxu0 0.0
    %323 = vmatpush1.msra.mxu0 0.0
    %324 = vmatprep.subr.mxu0 0.0
    %325 = vmatpush1.msra.mxu0 0.0
    %326 = vmatprep.subr.mxu0 0.0
    %327 = vmatpush1.msra.mxu0 0.0
    %328 = vmatprep.subr.mxu0 0.0
    %329 = vmatpush1.msra.mxu0 0.0
    %330 = vmatprep.subr.mxu0 0.0
    %331 = vmatpush1.msra.mxu0 0.0
    %332 = vmatprep.subr.mxu0 0.0
    %333 = vmatpush1.msra.mxu0 0.0
    %334 = vmatprep.subr.mxu0 0.0
    %335 = vmatpush1.msra.mxu0 0.0
    %336 = vmatprep.subr.mxu0 0.0
    %337 = vmatpush1.msra.mxu0 0.0
    %338 = vmatprep.subr.mxu0 0.0
    %339 = vmatpush1.msra.mxu0 0.0
    %340 = vmatprep.subr.mxu0 0.0
    %341 = vmatpush1.msra.mxu0 0.0
    %342 = vmatprep.subr.mxu0 0.0
    %343 = vmatpush1.msra.mxu0 0.0
    %344 = vmatprep.subr.mxu0 0.0
    %345 = vmatpush1.msra.mxu0 0.0
    %346 = vmatprep.subr.mxu0 0.0
    %347 = vmatpush1.msra.mxu0 0.0
    %348 = vmatprep.subr.mxu0 0.0
    %349 = vmatpush1.msra.mxu0 0.0
    %350 = vmatprep.subr.mxu0 0.0
    %351 = vmatpush1.msra.mxu0 0.0
    %352 = vmatprep.subr.mxu0 0.0
    %353 = vmatpush1.msra.mxu0 0.0
    %354 = vmatprep.subr.mxu0 0.0
    %355 = vmatpush1.msra.mxu0 0.0
    %356 = vmatprep.subr.mxu0 0.0
    %357 = vmatpush1.msra.mxu0 0.0
    %358 = vmatprep.mubr.f32.mxu0 0.0
    %v359 = vand.u32 %v108, 4294901760
    %v360 = vsub.f32 %v108, %v359
    %361 = vmatmul.mubr.f32.gmra.mrb[0].mxu0 %v360
    %v362 = vpop.f32.mrb[0].mxu0
    %v363 = vadd.f32 %v281, %v362
    %v364 = vpop.f32.mrb[0].mxu0
    %365 = vmatprep.mubr.f32.mxu0 0.0
    %v366 = vand.u32 %v110, 4294901760
    %v367 = vsub.f32 %v110, %v366
    %368 = vmatmul.mubr.f32.gmra.mrb[0].mxu0 %v367
    %v369 = vpop.f32.mrb[0].mxu0
    %v370 = vadd.f32 %v287, %v369
    %v371 = vpop.f32.mrb[0].mxu0
    %372 = vdwg.mxu0
    %373 = vmatprep.subr.mxu0 0.0
    %v374 = vand.u32 %v93, 4294901760
    %375 = vmatpush1.msra.mxu0 %v374
    %376 = vmatprep.subr.mxu0 0.0
    %v377 = vand.u32 %v114, 4294901760
    %378 = vmatpush1.msra.mxu0 %v377
    %379 = vmatprep.subr.mxu0 0.0
    %380 = vmatpush1.msra.mxu0 0.0
    %381 = vmatprep.subr.mxu0 0.0
    %382 = vmatpush1.msra.mxu0 0.0
    %383 = vmatprep.subr.mxu0 0.0
    %384 = vmatpush1.msra.mxu0 0.0
    %385 = vmatprep.subr.mxu0 0.0
    %386 = vmatpush1.msra.mxu0 0.0
    %387 = vmatprep.subr.mxu0 0.0
    %388 = vmatpush1.msra.mxu0 0.0
    %389 = vmatprep.subr.mxu0 0.0
    %390 = vmatpush1.msra.mxu0 0.0
    %391 = vmatprep.subr.mxu0 0.0
    %392 = vmatpush1.msra.mxu0 0.0
    %393 = vmatprep.subr.mxu0 0.0
    %394 = vmatpush1.msra.mxu0 0.0
    %395 = vmatprep.subr.mxu0 0.0
    %396 = vmatpush1.msra.mxu0 0.0
    %397 = vmatprep.subr.mxu0 0.0
    %398 = vmatpush1.msra.mxu0 0.0
    %399 = vmatprep.subr.mxu0 0.0
    %400 = vmatpush1.msra.mxu0 0.0
    %401 = vmatprep.subr.mxu0 0.0
    %402 = vmatpush1.msra.mxu0 0.0
    %403 = vmatprep.subr.mxu0 0.0
    %404 = vmatpush1.msra.mxu0 0.0
    %405 = vmatprep.subr.mxu0 0.0
    %406 = vmatpush1.msra.mxu0 0.0
    %407 = vmatprep.subr.mxu0 0.0
    %408 = vmatpush1.msra.mxu0 0.0
    %409 = vmatprep.subr.mxu0 0.0
    %410 = vmatpush1.msra.mxu0 0.0
    %411 = vmatprep.subr.mxu0 0.0
    %412 = vmatpush1.msra.mxu0 0.0
    %413 = vmatprep.subr.mxu0 0.0
    %414 = vmatpush1.msra.mxu0 0.0
    %415 = vmatprep.subr.mxu0 0.0
    %416 = vmatpush1.msra.mxu0 0.0
    %417 = vmatprep.subr.mxu0 0.0
    %418 = vmatpush1.msra.mxu0 0.0
    %419 = vmatprep.subr.mxu0 0.0
    %420 = vmatpush1.msra.mxu0 0.0
    %421 = vmatprep.subr.mxu0 0.0
    %422 = vmatpush1.msra.mxu0 0.0
    %423 = vmatprep.subr.mxu0 0.0
    %424 = vmatpush1.msra.mxu0 0.0
    %425 = vmatprep.subr.mxu0 0.0
    %426 = vmatpush1.msra.mxu0 0.0
    %427 = vmatprep.subr.mxu0 0.0
    %428 = vmatpush1.msra.mxu0 0.0
    %429 = vmatprep.subr.mxu0 0.0
    %430 = vmatpush1.msra.mxu0 0.0
    %431 = vmatprep.subr.mxu0 0.0
    %432 = vmatpush1.msra.mxu0 0.0
    %433 = vmatprep.subr.mxu0 0.0
    %434 = vmatpush1.msra.mxu0 0.0
    %435 = vmatprep.subr.mxu0 0.0
    %436 = vmatpush1.msra.mxu0 0.0
    %437 = vmatprep.subr.mxu0 0.0
    %438 = vmatpush1.msra.mxu0 0.0
    %439 = vmatprep.mubr.f32.mxu0 0.0
    %v440 = vand.u32 %v108, 4294901760
    %v441 = vsub.f32 %v108, %v440
    %v442 = vand.u32 %v441, 4294901760
    %443 = vmatmul.mubr.f32.gmra.mrb[0].mxu0 %v442
    %v444 = vpop.f32.mrb[0].mxu0
    %v445 = vadd.f32 %v363, %v444
    %v446 = vpop.f32.mrb[0].mxu0
    %447 = vmatprep.mubr.f32.mxu0 0.0
    %v448 = vand.u32 %v110, 4294901760
    %v449 = vsub.f32 %v110, %v448
    %v450 = vand.u32 %v449, 4294901760
    %451 = vmatmul.mubr.f32.gmra.mrb[0].mxu0 %v450
    %v452 = vpop.f32.mrb[0].mxu0
    %v453 = vadd.f32 %v370, %v452
    %v454 = vpop.f32.mrb[0].mxu0
    %455 = vdwg.mxu0
    %456 = vmatprep.subr.mxu0 0.0
    %v457 = vand.u32 %v93, 4294901760
    %v458 = vsub.f32 %v93, %v457
    %v459 = vand.u32 %v458, 4294901760
    %460 = vmatpush1.msra.mxu0 %v459
    %461 = vmatprep.subr.mxu0 0.0
    %v462 = vand.u32 %v114, 4294901760
    %v463 = vsub.f32 %v114, %v462
    %v464 = vand.u32 %v463, 4294901760
    %465 = vmatpush1.msra.mxu0 %v464
    %466 = vmatprep.subr.mxu0 0.0
    %467 = vmatpush1.msra.mxu0 0.0
    %468 = vmatprep.subr.mxu0 0.0
    %469 = vmatpush1.msra.mxu0 0.0
    %470 = vmatprep.subr.mxu0 0.0
    %471 = vmatpush1.msra.mxu0 0.0
    %472 = vmatprep.subr.mxu0 0.0
    %473 = vmatpush1.msra.mxu0 0.0
    %474 = vmatprep.subr.mxu0 0.0
    %475 = vmatpush1.msra.mxu0 0.0
    %476 = vmatprep.subr.mxu0 0.0
    %477 = vmatpush1.msra.mxu0 0.0
    %478 = vmatprep.subr.mxu0 0.0
    %479 = vmatpush1.msra.mxu0 0.0
    %480 = vmatprep.subr.mxu0 0.0
    %481 = vmatpush1.msra.mxu0 0.0
    %482 = vmatprep.subr.mxu0 0.0
    %483 = vmatpush1.msra.mxu0 0.0
    %484 = vmatprep.subr.mxu0 0.0
    %485 = vmatpush1.msra.mxu0 0.0
    %486 = vmatprep.subr.mxu0 0.0
    %487 = vmatpush1.msra.mxu0 0.0
    %488 = vmatprep.subr.mxu0 0.0
    %489 = vmatpush1.msra.mxu0 0.0
    %490 = vmatprep.subr.mxu0 0.0
    %491 = vmatpush1.msra.mxu0 0.0
    %492 = vmatprep.subr.mxu0 0.0
    %493 = vmatpush1.msra.mxu0 0.0
    %494 = vmatprep.subr.mxu0 0.0
    %495 = vmatpush1.msra.mxu0 0.0
    %496 = vmatprep.subr.mxu0 0.0
    %497 = vmatpush1.msra.mxu0 0.0
    %498 = vmatprep.subr.mxu0 0.0
    %499 = vmatpush1.msra.mxu0 0.0
    %500 = vmatprep.subr.mxu0 0.0
    %501 = vmatpush1.msra.mxu0 0.0
    %502 = vmatprep.subr.mxu0 0.0
    %503 = vmatpush1.msra.mxu0 0.0
    %504 = vmatprep.subr.mxu0 0.0
    %505 = vmatpush1.msra.mxu0 0.0
    %506 = vmatprep.subr.mxu0 0.0
    %507 = vmatpush1.msra.mxu0 0.0
    %508 = vmatprep.subr.mxu0 0.0
    %509 = vmatpush1.msra.mxu0 0.0
    %510 = vmatprep.subr.mxu0 0.0
    %511 = vmatpush1.msra.mxu0 0.0
    %512 = vmatprep.subr.mxu0 0.0
    %513 = vmatpush1.msra.mxu0 0.0
    %514 = vmatprep.subr.mxu0 0.0
    %515 = vmatpush1.msra.mxu0 0.0
    %516 = vmatprep.subr.mxu0 0.0
    %517 = vmatpush1.msra.mxu0 0.0
    %518 = vmatprep.subr.mxu0 0.0
    %519 = vmatpush1.msra.mxu0 0.0
    %520 = vmatprep.subr.mxu0 0.0
    %521 = vmatpush1.msra.mxu0 0.0
    %522 = vmatprep.subr.mxu0 0.0
    %523 = vmatpush1.msra.mxu0 0.0
    %524 = vmatprep.subr.mxu0 0.0
    %525 = vmatpush1.msra.mxu0 0.0
    %526 = vmatprep.mubr.f32.mxu0 0.0
    %v527 = vand.u32 %v108, 4294901760
    %528 = vmatmul.mubr.f32.gmra.mrb[0].mxu0 %v527
    %v529 = vpop.f32.mrb[0].mxu0
    %v530 = vadd.f32 %v445, %v529
    %v531 = vpop.f32.mrb[0].mxu0
    %532 = vmatprep.mubr.f32.mxu0 0.0
    %v533 = vand.u32 %v110, 4294901760
    %534 = vmatmul.mubr.f32.gmra.mrb[0].mxu0 %v533
    %v535 = vpop.f32.mrb[0].mxu0
    %v536 = vadd.f32 %v453, %v535
    %v537 = vpop.f32.mrb[0].mxu0
    %538 = vdwg.mxu0
    %539 = vmatprep.subr.mxu0 0.0
    %v540 = vand.u32 %v93, 4294901760
    %541 = vmatpush1.msra.mxu0 %v540
    %542 = vmatprep.subr.mxu0 0.0
    %v543 = vand.u32 %v114, 4294901760
    %544 = vmatpush1.msra.mxu0 %v543
    %545 = vmatprep.subr.mxu0 0.0
    %546 = vmatpush1.msra.mxu0 0.0
    %547 = vmatprep.subr.mxu0 0.0
    %548 = vmatpush1.msra.mxu0 0.0
    %549 = vmatprep.subr.mxu0 0.0
    %550 = vmatpush1.msra.mxu0 0.0
    %551 = vmatprep.subr.mxu0 0.0
    %552 = vmatpush1.msra.mxu0 0.0
    %553 = vmatprep.subr.mxu0 0.0
    %554 = vmatpush1.msra.mxu0 0.0
    %555 = vmatprep.subr.mxu0 0.0
    %556 = vmatpush1.msra.mxu0 0.0
    %557 = vmatprep.subr.mxu0 0.0
    %558 = vmatpush1.msra.mxu0 0.0
    %559 = vmatprep.subr.mxu0 0.0
    %560 = vmatpush1.msra.mxu0 0.0
    %561 = vmatprep.subr.mxu0 0.0
    %562 = vmatpush1.msra.mxu0 0.0
    %563 = vmatprep.subr.mxu0 0.0
    %564 = vmatpush1.msra.mxu0 0.0
    %565 = vmatprep.subr.mxu0 0.0
    %566 = vmatpush1.msra.mxu0 0.0
    %567 = vmatprep.subr.mxu0 0.0
    %568 = vmatpush1.msra.mxu0 0.0
    %569 = vmatprep.subr.mxu0 0.0
    %570 = vmatpush1.msra.mxu0 0.0
    %571 = vmatprep.subr.mxu0 0.0
    %572 = vmatpush1.msra.mxu0 0.0
    %573 = vmatprep.subr.mxu0 0.0
    %574 = vmatpush1.msra.mxu0 0.0
    %575 = vmatprep.subr.mxu0 0.0
    %576 = vmatpush1.msra.mxu0 0.0
    %577 = vmatprep.subr.mxu0 0.0
    %578 = vmatpush1.msra.mxu0 0.0
    %579 = vmatprep.subr.mxu0 0.0
    %580 = vmatpush1.msra.mxu0 0.0
    %581 = vmatprep.subr.mxu0 0.0
    %582 = vmatpush1.msra.mxu0 0.0
    %583 = vmatprep.subr.mxu0 0.0
    %584 = vmatpush1.msra.mxu0 0.0
    %585 = vmatprep.subr.mxu0 0.0
    %586 = vmatpush1.msra.mxu0 0.0
    %587 = vmatprep.subr.mxu0 0.0
    %588 = vmatpush1.msra.mxu0 0.0
    %589 = vmatprep.subr.mxu0 0.0
    %590 = vmatpush1.msra.mxu0 0.0
    %591 = vmatprep.subr.mxu0 0.0
    %592 = vmatpush1.msra.mxu0 0.0
    %593 = vmatprep.subr.mxu0 0.0
    %594 = vmatpush1.msra.mxu0 0.0
    %595 = vmatprep.subr.mxu0 0.0
    %596 = vmatpush1.msra.mxu0 0.0
    %597 = vmatprep.subr.mxu0 0.0
    %598 = vmatpush1.msra.mxu0 0.0
    %599 = vmatprep.subr.mxu0 0.0
    %600 = vmatpush1.msra.mxu0 0.0
    %601 = vmatprep.subr.mxu0 0.0
    %602 = vmatpush1.msra.mxu0 0.0
    %603 = vmatprep.subr.mxu0 0.0
    %604 = vmatpush1.msra.mxu0 0.0
    %605 = vmatprep.mubr.f32.mxu0 0.0
    %v606 = vand.u32 %v108, 4294901760
    %607 = vmatmul.mubr.f32.gmra.mrb[0].mxu0 %v606
    %v608 = vpop.f32.mrb[0].mxu0
    %v609 = vadd.f32 %v530, %v608
    %v610 = vpop.f32.mrb[0].mxu0
    %611 = vmatprep.mubr.f32.mxu0 0.0
    %v612 = vand.u32 %v110, 4294901760
    %613 = vmatmul.mubr.f32.gmra.mrb[0].mxu0 %v612
    %v614 = vpop.f32.mrb[0].mxu0
    %v615 = vadd.f32 %v536, %v614
    %v616 = vpop.f32.mrb[0].mxu0
    %617 = vdwg.mxu0
    %v618 = vmul.f32 %v609, 0.1
    %v619 = vmul.f32 %v615, 0.1
    %v620 = vmax.f32 %v609, %v618
    %v621 = vmax.f32 %v615, %v619
    %622 = vset.pattern.permute.xlu0 14
    %623 = vperm.xlu0 %622, %v43
    %v624 = vpop.permute.xlu0 %623
    %626 = vset.pattern.permute.xlu0 14
    %627 = vperm.xlu0 %626, %v44
    %v628 = vpop.permute.xlu0 %627
    %v630 = vmul.f32 %v624, %v620
    %v631 = vmul.f32 %v628, %v621
    %v632 = vsel %vm112, %v631, 0.0
    %v633 = vadd.f32 %v630, %v632
    %v634 = vrot.slane %v633, 4
    %v635 = vadd.f32 %v633, %v634
    %v636 = vrot.slane %v635, 2
    %v637 = vadd.f32 %v635, %v636
    %v638 = vrot.slane %v637, 1
    %v639 = vadd.f32 %v637, %v638
    %640 = vset.pattern.permute.xlu0 15
    %641 = vperm.xlu0 %640, %v43
    %v642 = vpop.permute.xlu0 %641
    %v644 = vadd.f32 %v639, %v642
    %645 = vst [vmem:[#allocation7] sm:$0x1] %v644
    // Predicated region
    $region22: #{tpu_custom_call.1} parent=1 // pred_check
      _
    $region23: #{tpu_custom_call.1} parent=1 // pred_check_branch
      %647 = sbr.rel (0) target = $region25
    $region24: #{tpu_custom_call.1} parent=1 // pred_region
      %s649 = ssub.s32 16, 16
      %650 = vsyncadd [#allocation4], %s649
      %s652 = sshll.u32 [#allocation7], 4
      %s653 = int_to_ptr.vmem [resolvable:$true] %s652
      %655 = dma.vmem_to_hbm [thread:$0]  %s653, 16, %s3, [#allocation4]
    $region25: #{tpu_custom_call.1} parent=1 // pred_fallthru
      _
    // Predicated region
    $region26: #{tpu_custom_call.1} parent=1 // pred_check
      _
    $region27: #{tpu_custom_call.1} parent=1 // pred_check_branch
      %657 = sbr.rel (0) target = $region29
    $region28: #{tpu_custom_call.1} parent=1 // pred_region
      %658 = dma.done [#allocation4], 16
    $region29: #{tpu_custom_call.1} parent=1 // pred_fallthru
      _
    %659 = vsyncpa [#allocation3], 1
    %660 = vsyncpa [#allocation6], 1
    %661 = vsyncpa [#allocation4], 1

</llo_original>
